<compile_context>
chip_gen: v6e
topology: v6e:2x2x1
jax: 0.10.0
libtpu: 0.0.40
codegen_flags: <defaults>
</compile_context>

<pallas_src>
import jax
import jax.numpy as jnp
from jax import lax
from jax.experimental import pallas as pl
from jax.experimental.pallas import tpu as pltpu


def _proj_kernel(patches_ref, w_ref, b_ref, o_ref):
    # patches_ref: (Np, K) compute dtype (streamed per image)
    # w_ref:       (K, E)  compute dtype (resident)
    # b_ref:       (1, E)  f32           (resident)
    # o_ref:       (Np, E) out dtype
    acc = jnp.dot(patches_ref[...], w_ref[...],
                  preferred_element_type=jnp.float32)
    o_ref[...] = (acc + b_ref[...]).astype(o_ref.dtype)


def conv_linear_projection(x, weight, bias, patch_size, *,
                           compute_dtype=jnp.bfloat16, out_dtype=None):
    """x: (B, C, H, W) NCHW; weight: (E, C, p_h, p_h) (nn.Conv2d layout); bias: (E,)

    Returns (B, (H//p_h)*(W//p_h), E)  ==  rearrange(conv(x), 'b e p q -> b (p q) e').

    Note: like the PyTorch module (Conv2d(in, d, p_h, p_h)), patch_size[1] is
    ignored -- kernel and stride are both p_h.  With bf16 compute_dtype the
    result matches an f32 conv only to bf16 accuracy (f32 accumulation).
    """
    p_h, _p_w = patch_size                      # p_w unused, matching the module
    B, C, H, W = x.shape
    E = weight.shape[0]
    assert weight.shape == (E, C, p_h, p_h), "Conv2d weight must be (d_model, C, p_h, p_h)"
    Hp, Wp = H // p_h, W // p_h                 # VALID conv, stride == kernel
    Np = Hp * Wp
    K = C * p_h * p_h
    out_dtype = x.dtype if out_dtype is None else out_dtype

    # ---- wrapper glue (kept minimal: no pads; cast fused into the transpose) ----
    x_c = x[:, :, :Hp * p_h, :Wp * p_h].astype(compute_dtype)
    patches = x_c.reshape(B, C, Hp, p_h, Wp, p_h)
    patches = patches.transpose(0, 2, 4, 1, 3, 5).reshape(B, Np, K)   # (c,kh,kw) order

    w_mat = weight.reshape(E, K).T.astype(compute_dtype)              # (K, E)
    b_mat = bias.astype(jnp.float32).reshape(1, E)

    c_sz = jnp.dtype(compute_dtype).itemsize
    o_sz = jnp.dtype(out_dtype).itemsize
    # Working set: double-buffered patch/output tiles + resident weight/bias.
    need = (2 * Np * K * c_sz + 2 * Np * E * o_sz + K * E * c_sz + E * 4)
    vmem_limit = int(min(64 * 1024 * 1024, max(16 * 1024 * 1024, 2 * need)))

    cost = pl.CostEstimate(
        flops=2 * B * Np * K * E,
        transcendentals=0,
        bytes_accessed=(B * Np * K * c_sz + K * E * c_sz + E * 4
                        + B * Np * E * o_sz),
    )

    def _build_and_call(single_buffer_resident):
        if single_buffer_resident:
            # Grid-invariant operands: single VMEM buffer (halves their footprint)
            # and let XLA fuse the patch-matrix producer into the input fetch.
            w_spec = pl.BlockSpec((K, E), lambda b: (0, 0), pipeline_mode=pl.Buffered(1))
            b_spec = pl.BlockSpec((1, E), lambda b: (0, 0), pipeline_mode=pl.Buffered(1))
            params = pltpu.CompilerParams(
                dimension_semantics=("parallel",),
                vmem_limit_bytes=vmem_limit,
                allow_input_fusion=[True, False, False],
            )
        else:
            w_spec = pl.BlockSpec((K, E), lambda b: (0, 0))
            b_spec = pl.BlockSpec((1, E), lambda b: (0, 0))
            params = pltpu.CompilerParams(
                dimension_semantics=("parallel",),
                vmem_limit_bytes=vmem_limit,
            )
        return pl.pallas_call(
            _proj_kernel,
            out_shape=jax.ShapeDtypeStruct((B, Np, E), out_dtype),
            grid_spec=pl.GridSpec(
                grid=(B,),
                in_specs=[
                    pl.BlockSpec((None, Np, K), lambda b: (b, 0, 0)),   # streamed
                    w_spec,                                             # resident
                    b_spec,                                             # resident
                ],
                out_specs=pl.BlockSpec((None, Np, E), lambda b: (b, 0, 0)),
            ),
            compiler_params=params,
            cost_estimate=cost,
        )(patches, w_mat, b_mat)

    try:
        return _build_and_call(True)
    except Exception:
        # Conservative fallback (double-buffered resident weight, no input fusion)
        # for Pallas builds that reject single-buffered pipeline_mode.
        return _build_and_call(False)


def reference(x, weight, bias, patch_size):
    p_h, _ = patch_size
    y = lax.conv_general_dilated(
        x, weight, window_strides=(p_h, p_h), padding="VALID",
        dimension_numbers=("NCHW", "OIHW", "NCHW"))
    y = y + bias.reshape(1, -1, 1, 1)
    B, E, Hp, Wp = y.shape
    return y.transpose(0, 2, 3, 1).reshape(B, Hp * Wp, E)   # b e p q -> b (p q) e


if __name__ == "__main__":
    # Small shapes consistent with the module's forward:
    # batch=2, in_channel=3, img 16x16, patch=(4,4), d_model=32.
    B, C, H, W = 2, 3, 16, 16
    patch_size = (4, 4)
    d_model = 32

    key = jax.random.PRNGKey(0)
    kx, kw_key, kb_key = jax.random.split(key, 3)
    x = jax.random.normal(kx, (B, C, H, W), dtype=jnp.float32)
    weight = 0.1 * jax.random.normal(
        kw_key, (d_model, C, patch_size[0], patch_size[0]), dtype=jnp.float32)
    bias = 0.1 * jax.random.normal(kb_key, (d_model,), dtype=jnp.float32)

    out = conv_linear_projection(x, weight, bias, patch_size)
    out = jax.block_until_ready(out)

    ref = reference(x, weight, bias, patch_size)
    Np = (H // patch_size[0]) * (W // patch_size[0])
    assert out.shape == (B, Np, d_model)
    assert out.dtype == x.dtype
    # bf16 MXU inputs with f32 accumulation -> relaxed tolerance vs f32 conv ref.
    assert jnp.allclose(out, ref, atol=3e-2, rtol=3e-2)

    # Optional bf16 output path (halves the output writeback stream for bf16 models).
    out_bf16 = jax.block_until_ready(
        conv_linear_projection(x, weight, bias, patch_size, out_dtype=jnp.bfloat16))
    assert out_bf16.dtype == jnp.bfloat16
    assert jnp.allclose(out_bf16.astype(jnp.float32), ref, atol=5e-2, rtol=5e-2)

    print("KERNEL_OK")
</pallas_src>

<mosaic_0001>
module attributes {stable_mosaic.version = 11 : i64} {
  func.func @_proj_kernel(%arg0: i32, %arg1: memref<1x16x48xbf16, #tpu.memory_space<vmem>>, %arg2: memref<48x32xbf16, #tpu.memory_space<vmem>>, %arg3: memref<1x32xf32, #tpu.memory_space<vmem>>, %arg4: memref<1x16x32xf32, #tpu.memory_space<vmem>>) attributes {dimension_semantics = [#tpu.dimension_semantics<parallel>], iteration_bounds = array<i64: 2>, scalar_prefetch = 0 : i64, scratch_operands = 0 : i64, tpu.core_type = #tpu.core_type<tc>, window_params = [{transform_indices = @transform_0, window_bounds = array<i64: 1, 16, 48>}, {pipeline_mode = #tpu.pipeline_mode<synchronous>, transform_indices = @transform_1, window_bounds = array<i64: 48, 32>}, {pipeline_mode = #tpu.pipeline_mode<synchronous>, transform_indices = @transform_2, window_bounds = array<i64: 1, 32>}, {transform_indices = @transform_3, window_bounds = array<i64: 1, 16, 32>}]} {
    %c0 = arith.constant 0 : index
    %c0_0 = arith.constant 0 : index
    %c0_1 = arith.constant 0 : index
    %0 = vector.load %arg1[%c0, %c0_0, %c0_1] : memref<1x16x48xbf16, #tpu.memory_space<vmem>>, vector<1x16x48xbf16>
    %1 = vector.shape_cast %0 : vector<1x16x48xbf16> to vector<16x48xbf16>
    %c0_2 = arith.constant 0 : index
    %c0_3 = arith.constant 0 : index
    %2 = vector.load %arg2[%c0_2, %c0_3] : memref<48x32xbf16, #tpu.memory_space<vmem>>, vector<48x32xbf16>
    %cst = arith.constant dense<0.000000e+00> : vector<16x32xf32>
    %3 = tpu.matmul %1, %2, %cst {dimension_numbers = #tpu.dot_dimension_numbers<[1], [0], [0], [1], [0, 0, 1, 1], [], []>} : vector<16x48xbf16>, vector<48x32xbf16>, vector<16x32xf32> -> vector<16x32xf32>
    %c0_4 = arith.constant 0 : index
    %c0_5 = arith.constant 0 : index
    %4 = vector.load %arg3[%c0_4, %c0_5] : memref<1x32xf32, #tpu.memory_space<vmem>>, vector<1x32xf32>
    %5 = vector.broadcast %4 : vector<1x32xf32> to vector<16x32xf32>
    %6 = arith.addf %3, %5 : vector<16x32xf32>
    %c0_6 = arith.constant 0 : index
    %c0_7 = arith.constant 0 : index
    %c0_8 = arith.constant 0 : index
    %7 = vector.load %arg4[%c0_6, %c0_7, %c0_8] : memref<1x16x32xf32, #tpu.memory_space<vmem>>, vector<1x16x32xf32>
    %8 = vector.shape_cast %7 : vector<1x16x32xf32> to vector<16x32xf32>
    %9 = vector.shape_cast %6 : vector<16x32xf32> to vector<1x16x32xf32>
    tpu.vector_store %arg4[%c0_6, %c0_7, %c0_8], %9 {strides = array<i32>} : memref<1x16x32xf32, #tpu.memory_space<vmem>>, vector<1x16x32xf32>,
    return
  }
  func.func @transform_0(%arg0: i32) -> (i32, i32, i32) {
    %c0_i32 = arith.constant 0 : i32
    %c0_i32_0 = arith.constant 0 : i32
    %c0_i32_1 = arith.constant 0 : i32
    return %arg0, %c0_i32, %c0_i32_0 : i32, i32, i32
  }
  func.func @transform_1(%arg0: i32) -> (i32, i32) {
    %c0_i32 = arith.constant 0 : i32
    %c0_i32_0 = arith.constant 0 : i32
    %c0_i32_1 = arith.constant 0 : i32
    return %c0_i32, %c0_i32_0 : i32, i32
  }
  func.func @transform_2(%arg0: i32) -> (i32, i32) {
    %c0_i32 = arith.constant 0 : i32
    %c0_i32_0 = arith.constant 0 : i32
    %c0_i32_1 = arith.constant 0 : i32
    return %c0_i32, %c0_i32_0 : i32, i32
  }
  func.func @transform_3(%arg0: i32) -> (i32, i32, i32) {
    %c0_i32 = arith.constant 0 : i32
    %c0_i32_0 = arith.constant 0 : i32
    %c0_i32_1 = arith.constant 0 : i32
    return %arg0, %c0_i32, %c0_i32_0 : i32, i32, i32
  }
}

module attributes {stable_mosaic.version = 11 : i64} {
  func.func @_proj_kernel(%arg0: i32, %arg1: memref<1x16x48xbf16, #tpu.memory_space<vmem>>, %arg2: memref<48x32xbf16, #tpu.memory_space<vmem>>, %arg3: memref<1x32xf32, #tpu.memory_space<vmem>>, %arg4: memref<1x16x32xf32, #tpu.memory_space<vmem>>) attributes {dimension_semantics = [#tpu.dimension_semantics<parallel>], iteration_bounds = array<i64: 2>, scalar_prefetch = 0 : i64, scratch_operands = 0 : i64, tpu.core_type = #tpu.core_type<tc>, window_params = [{transform_indices = @transform_0, window_bounds = array<i64: 1, 16, 48>}, {pipeline_mode = #tpu.pipeline_mode<synchronous>, transform_indices = @transform_1, window_bounds = array<i64: 48, 32>}, {pipeline_mode = #tpu.pipeline_mode<synchronous>, transform_indices = @transform_2, window_bounds = array<i64: 1, 32>}, {transform_indices = @transform_3, window_bounds = array<i64: 1, 16, 32>}]} {
    %c0 = arith.constant 0 : index
    %c0_0 = arith.constant 0 : index
    %c0_1 = arith.constant 0 : index
    %0 = vector.load %arg1[%c0, %c0_0, %c0_1] : memref<1x16x48xbf16, #tpu.memory_space<vmem>>, vector<1x16x48xbf16>
    %1 = vector.shape_cast %0 : vector<1x16x48xbf16> to vector<16x48xbf16>
    %c0_2 = arith.constant 0 : index
    %c0_3 = arith.constant 0 : index
    %2 = vector.load %arg2[%c0_2, %c0_3] : memref<48x32xbf16, #tpu.memory_space<vmem>>, vector<48x32xbf16>
    %cst = arith.constant dense<0.000000e+00> : vector<16x32xf32>
    %3 = tpu.matmul %1, %2, %cst {dimension_numbers = #tpu.dot_dimension_numbers<[1], [0], [0], [1], [0, 0, 1, 1], [], []>} : vector<16x48xbf16>, vector<48x32xbf16>, vector<16x32xf32> -> vector<16x32xf32>
    %c0_4 = arith.constant 0 : index
    %c0_5 = arith.constant 0 : index
    %4 = vector.load %arg3[%c0_4, %c0_5] : memref<1x32xf32, #tpu.memory_space<vmem>>, vector<1x32xf32>
    %5 = vector.broadcast %4 : vector<1x32xf32> to vector<16x32xf32>
    %6 = arith.addf %3, %5 : vector<16x32xf32>
    %c0_6 = arith.constant 0 : index
    %c0_7 = arith.constant 0 : index
    %c0_8 = arith.constant 0 : index
    %7 = vector.load %arg4[%c0_6, %c0_7, %c0_8] : memref<1x16x32xf32, #tpu.memory_space<vmem>>, vector<1x16x32xf32>
    %8 = vector.shape_cast %7 : vector<1x16x32xf32> to vector<16x32xf32>
    %9 = vector.shape_cast %6 : vector<16x32xf32> to vector<1x16x32xf32>
    tpu.vector_store %arg4[%c0_6, %c0_7, %c0_8], %9 {strides = array<i32>} : memref<1x16x32xf32, #tpu.memory_space<vmem>>, vector<1x16x32xf32>,
    return
  }
  func.func @transform_0(%arg0: i32) -> (i32, i32, i32) {
    %c0_i32 = arith.constant 0 : i32
    %c0_i32_0 = arith.constant 0 : i32
    %c0_i32_1 = arith.constant 0 : i32
    return %arg0, %c0_i32, %c0_i32_0 : i32, i32, i32
  }
  func.func @transform_1(%arg0: i32) -> (i32, i32) {
    %c0_i32 = arith.constant 0 : i32
    %c0_i32_0 = arith.constant 0 : i32
    %c0_i32_1 = arith.constant 0 : i32
    return %c0_i32, %c0_i32_0 : i32, i32
  }
  func.func @transform_2(%arg0: i32) -> (i32, i32) {
    %c0_i32 = arith.constant 0 : i32
    %c0_i32_0 = arith.constant 0 : i32
    %c0_i32_1 = arith.constant 0 : i32
    return %c0_i32, %c0_i32_0 : i32, i32
  }
  func.func @transform_3(%arg0: i32) -> (i32, i32, i32) {
    %c0_i32 = arith.constant 0 : i32
    %c0_i32_0 = arith.constant 0 : i32
    %c0_i32_1 = arith.constant 0 : i32
    return %arg0, %c0_i32, %c0_i32_0 : i32, i32, i32
  }
}

</mosaic_0001>

<llo_original>
// kernel: tpu_custom_call.1
$region0: #{tpu_custom_call.1}
  #allocation0 [shape = 'u32[]', space=smem, size = 0x4, offset = 0x4, fixed_abs, tag = 'smem constant byte address 0x4 - core index']
  #allocation1 [shape = 'u32[144,128]{1,0:T(1,128)}', space=vmem, size = 0x12000, scoped, tag = 'internal scratch']
  %s0 = inlined_call_operand.vmem [shape: bf16[2,16,48], index: 0, kind: input, shape index: {}]
  %s1 = inlined_call_operand.vmem [shape: bf16[48,32], index: 1, kind: input, shape index: {}]
  %s2 = inlined_call_operand.vmem [shape: f32[1,32], index: 2, kind: input, shape index: {}]
  %s3 = inlined_call_operand.hbm [shape: f32[2,16,32], index: 3, kind: output, shape index: {}]
  %s4 = sld [smem:[#allocation0]]
  $region45: #{tpu_custom_call.1} parent=0
    _
  %s6 = ssub.s32 1, %s4
  %s7 = scalar_select 0, %s6, %s4
  $region1: #{tpu_custom_call.1} parent=0
    #allocation2 [shape = 'u8[16384]{0}', space=vmem, size = 0x4000, scoped, tag = 'output window, operand 0']
    #allocation3 [shape = 's32[2]{0}', space=sflag, size = 0x8, scoped, tag = 'scoped memory for tpu_custom_call.1']
    %8 = vsyncpa [#allocation3], 0
    %s9 = scalar_lea.sflag [#allocation3], 1
    %10 = vsyncpa %s9, 0
    loop: start=0, step=1, limit=4
    $region2: #{tpu_custom_call.1} parent=1 // loop_pre_header
      _
    $region3: #{tpu_custom_call.1} parent=1 // loop_header
      %s12 = sphi 0, %s16
      %p13 = scmp.ge.s32.totalorder %s12, 4
      %s22 = sphi 0, %s24
      %s25 = sphi 0, %s22
      %s26 = sphi 0, %s25
      %s42 = sphi 0, %s26
      %s46 = sphi 0, %s46
      %s48 = sphi 0, %s46
      %s49 = sphi 0, %s48
      %s63 = sphi 0, %s49
      %s67 = sphi 0, %s67
      %s69 = sphi 0, %s67
      %s70 = sphi 0, %s69
      %s84 = sphi 0, %s70
      %s90 = sphi 0, %s92
      %s93 = sphi 0, %s90
      %s94 = sphi 0, %s93
      %s110 = sphi 0, %s94
    $region4: #{tpu_custom_call.1} parent=1 // loop_header_branch
      %15 = sbr.rel (%p13) target = $region8
    $region5: #{tpu_custom_call.1} parent=1 // loop_body
      %s17 = ssub.s32 %s12, 1
      %s18 = ssub.s32 %s12, 2
      %s19 = sadd.s32 %s12, 1
      %s20 = ssub.s32 %s12, %s19
      %p21 = scmp.eq.s32.totalorder %s20, 0
      %s23 = sadd.s32 %s22, 1
      %s24 = scalar_select %p21, %s22, %s23
      %p27 = pneg %p21
      %p28 = scmp.eq.s32.totalorder %s12, 1
      %p29 = por %p27, %p28
      %p30 = scmp.ne.s32.totalorder %s22, %s25
      %p31 = scmp.eq.s32.totalorder %s12, 0
      %p32 = por %p30, %p31
      %p33 = scmp.ne.s32.totalorder %s22, %s25
      %p34 = scmp.eq.s32.totalorder %s17, 1
      %p35 = por %p33, %p34
      %p36 = scmp.ne.s32.totalorder %s25, %s26
      %p37 = scmp.eq.s32.totalorder %s17, 0
      %p38 = por %p36, %p37
      %p39 = scmp.ne.s32.totalorder %s25, %s26
      %p40 = scmp.eq.s32.totalorder %s18, 1
      %p41 = por %p39, %p40
      %p43 = scmp.ne.s32.totalorder %s26, %s42
      %p44 = scmp.eq.s32.totalorder %s18, 0
      %p45 = por %p43, %p44
      %s47 = sadd.s32 %s46, 1
      %p50 = scmp.eq.s32.totalorder %s12, 1
      %p51 = scmp.ne.s32.totalorder %s46, %s48
      %p52 = scmp.eq.s32.totalorder %s12, 0
      %p53 = por %p51, %p52
      %p54 = scmp.ne.s32.totalorder %s46, %s48
      %p55 = scmp.eq.s32.totalorder %s17, 1
      %p56 = por %p54, %p55
      %p57 = scmp.ne.s32.totalorder %s48, %s49
      %p58 = scmp.eq.s32.totalorder %s17, 0
      %p59 = por %p57, %p58
      %p60 = scmp.ne.s32.totalorder %s48, %s49
      %p61 = scmp.eq.s32.totalorder %s18, 1
      %p62 = por %p60, %p61
      %p64 = scmp.ne.s32.totalorder %s49, %s63
      %p65 = scmp.eq.s32.totalorder %s18, 0
      %p66 = por %p64, %p65
      %s68 = sadd.s32 %s67, 1
      %p71 = scmp.eq.s32.totalorder %s12, 1
      %p72 = scmp.ne.s32.totalorder %s67, %s69
      %p73 = scmp.eq.s32.totalorder %s12, 0
      %p74 = por %p72, %p73
      %p75 = scmp.ne.s32.totalorder %s67, %s69
      %p76 = scmp.eq.s32.totalorder %s17, 1
      %p77 = por %p75, %p76
      %p78 = scmp.ne.s32.totalorder %s69, %s70
      %p79 = scmp.eq.s32.totalorder %s17, 0
      %p80 = por %p78, %p79
      %p81 = scmp.ne.s32.totalorder %s69, %s70
      %p82 = scmp.eq.s32.totalorder %s18, 1
      %p83 = por %p81, %p82
      %p85 = scmp.ne.s32.totalorder %s70, %s84
      %p86 = scmp.eq.s32.totalorder %s18, 0
      %p87 = por %p85, %p86
      %s88 = ssub.s32 %s12, %s19
      %p89 = scmp.eq.s32.totalorder %s88, 0
      %s91 = sadd.s32 %s90, 1
      %s92 = scalar_select %p89, %s90, %s91
      %p95 = pneg %p89
      %p96 = scmp.eq.s32.totalorder %s12, 1
      %p97 = por %p95, %p96
      %p98 = scmp.ne.s32.totalorder %s90, %s93
      %p99 = scmp.eq.s32.totalorder %s12, 0
      %p100 = por %p98, %p99
      %p101 = scmp.ne.s32.totalorder %s90, %s93
      %p102 = scmp.eq.s32.totalorder %s17, 1
      %p103 = por %p101, %p102
      %p104 = scmp.ne.s32.totalorder %s93, %s94
      %p105 = scmp.eq.s32.totalorder %s17, 0
      %p106 = por %p104, %p105
      %p107 = scmp.ne.s32.totalorder %s93, %s94
      %p108 = scmp.eq.s32.totalorder %s18, 1
      %p109 = por %p107, %p108
      %p111 = scmp.ne.s32.totalorder %s94, %s110
      %p112 = scmp.eq.s32.totalorder %s18, 0
      %p113 = por %p111, %p112
      %p114 = scmp.le.s32.totalorder 1, %s12
      %p115 = scmp.lt.s32.totalorder %s12, 3
      %p116 = pnand %p114, %p115
      %p117 = pneg %p116
      // Predicated region
      $region9: #{tpu_custom_call.1} parent=5 // pred_check
        _
      $region10: #{tpu_custom_call.1} parent=5 // pred_check_branch
        %119 = sbr.rel (%p116) target = $region12
      $region11: #{tpu_custom_call.1} parent=5 // pred_region
        %s120 = ssub.s32 %s12, 1
        // Predicated region
        $region13: #{tpu_custom_call.1} parent=11 // pred_check
          %p121 = pneg %p59
        $region14: #{tpu_custom_call.1} parent=11 // pred_check_branch
          %123 = sbr.rel (%p121) target = $region16
        $region15: #{tpu_custom_call.1} parent=11 // pred_region
          _
        $region16: #{tpu_custom_call.1} parent=11 // pred_fallthru
          _
        // Predicated region
        $region17: #{tpu_custom_call.1} parent=11 // pred_check
          %p124 = pneg %p80
        $region18: #{tpu_custom_call.1} parent=11 // pred_check_branch
          %126 = sbr.rel (%p124) target = $region20
        $region19: #{tpu_custom_call.1} parent=11 // pred_region
          _
        $region20: #{tpu_custom_call.1} parent=11 // pred_fallthru
          _
      $region12: #{tpu_custom_call.1} parent=5 // pred_fallthru
        _
      %p127 = scmp.lt.s32.totalorder %s12, 2
      // Predicated region
      $region21: #{tpu_custom_call.1} parent=5 // pred_check
        %p128 = pneg %p127
      $region22: #{tpu_custom_call.1} parent=5 // pred_check_branch
        %130 = sbr.rel (%p128) target = $region24
      $region23: #{tpu_custom_call.1} parent=5 // pred_region
        // Predicated region
        $region25: #{tpu_custom_call.1} parent=23 // pred_check
          %p131 = pneg %p32
        $region26: #{tpu_custom_call.1} parent=23 // pred_check_branch
          %133 = sbr.rel (%p131) target = $region28
        $region27: #{tpu_custom_call.1} parent=23 // pred_region
          %p134 = scmp.lt.s32.totalorder %s12, 1
          %s135 = scalar_select %p134, %s12, 1
          %s136 = smul.addr %s135, 2
          %s137 = smul.addr %s136, 4
          %s138 = scalar_lea.vmem %s0, %s137
        $region28: #{tpu_custom_call.1} parent=23 // pred_fallthru
          _
      $region24: #{tpu_custom_call.1} parent=5 // pred_fallthru
        _
      %p139 = scmp.le.s32.totalorder 1, %s12
      %p140 = scmp.lt.s32.totalorder %s12, 3
      %p141 = pnand %p139, %p140
      %p142 = pneg %p141
      // Predicated region
      $region29: #{tpu_custom_call.1} parent=5 // pred_check
        _
      $region30: #{tpu_custom_call.1} parent=5 // pred_check_branch
        %144 = sbr.rel (%p141) target = $region32
      $region31: #{tpu_custom_call.1} parent=5 // pred_region
        %s145 = ssub.s32 %s12, 1
        %p146 = scmp.lt.s32.totalorder %s17, 1
        %s147 = scalar_select %p146, %s17, 1
        %s148 = smul.addr %s147, 2
        %s149 = smul.addr %s148, 4
        %s150 = scalar_lea.vmem %s0, %s149
        %p151 = pneg %p38
        %p152 = pneg %p35
        %p153 = pneg %p59
        %p154 = pneg %p56
        %p155 = pneg %p80
        %p156 = pneg %p77
        %p157 = pneg %p106
        %p158 = pneg %p103
        %s159 = sand.u32 %s93, 1
        %s160 = scalar_lea.sflag [#allocation3], %s159
        %s161 = sand.u32 %s93, 1
        %s162 = smul.addr %s161, 16
        %s163 = scalar_lea.vmem [#allocation2], %s162
        %p164 = scmp.lt.s32.totalorder %s17, 1
        %s165 = scalar_select %p164, %s17, 1
        %s166 = smul.addr %s165, 2
        %s167 = smul.addr %s166, 4
        %s168 = scalar_lea.vmem %s0, %s167
        %v170 = vld [vmem:[%s168] sm:$0xf]
        %v171 = vld [vmem:[%s168 + $0x4] sm:$0xf]
        %v172 = vld [vmem:[%s1] sm:$0xf]
        %v173 = vld [vmem:[%s1 + $0x4] sm:$0xf]
        %v174 = vld [vmem:[%s1 + $0x8] sm:$0xf]
        %v175 = vld [vmem:[%s1 + $0xc] sm:$0xf]
        %v176 = vld [vmem:[%s1 + $0x10] sm:$0xf]
        %v177 = vld [vmem:[%s1 + $0x14] sm:$0xf]
        %v178 = vld [vmem:[%s2] sm:$0x1]
        %v180 = vlaneseq
        %v181 = vshrl.u32 %v180, 7
        %v182 = vsub.s32 0, %v181
        %v183 = vrot.slane %v178, %v182
        %v187 = vunpack.c.l.b16 %v170
        %v188 = vunpack.c.l.b16 %v171
        %v189 = vpack.c.b16 %v188, %v187
        %v196 = vunpack.c.l.b16 %v172
        %v197 = vunpack.c.l.b16 %v173
        %v198 = vunpack.c.l.b16 %v174
        %v199 = vunpack.c.l.b16 %v175
        %v200 = vunpack.c.l.b16 %v176
        %v201 = vunpack.c.l.b16 %v177
        %v202 = vpack.c.b16 %v197, %v196
        %v203 = vpack.c.b16 %v199, %v198
        %v204 = vpack.c.b16 %v201, %v200
        %vm208 = vcmask 392192
        %v210 = vsel %vm208, %v189, 0
        %212 = vmatprep.subr.bf16.mxu0 0
        %213 = vmatpush1.bf16.msra.mxu0 0
        %214 = vmatprep.subr.bf16.mxu0 0
        %215 = vmatpush1.bf16.msra.mxu0 0
        %216 = vmatprep.subr.bf16.mxu0 0
        %217 = vmatpush1.bf16.msra.mxu0 0
        %218 = vmatprep.subr.bf16.mxu0 0
        %219 = vmatpush1.bf16.msra.mxu0 0
        %220 = vmatprep.subr.bf16.mxu0 0
        %221 = vmatpush1.bf16.msra.mxu0 0
        %222 = vmatprep.subr.bf16.mxu0 0
        %223 = vmatpush1.bf16.msra.mxu0 %v204
        %224 = vmatprep.subr.bf16.mxu0 0
        %225 = vmatpush1.bf16.msra.mxu0 %v203
        %226 = vmatprep.subr.bf16.mxu0 0
        %227 = vmatpush1.bf16.msra.mxu0 %v202
        %228 = vmatprep.subr.bf16.mxu0 0
        %229 = vmatpush2.bf16.msra.mxu0 0
        %230 = vmatprep.subr.bf16.mxu0 0
        %231 = vmatpush2.bf16.msra.mxu0 0
        %232 = vmatprep.subr.bf16.mxu0 0
        %233 = vmatpush2.bf16.msra.mxu0 0
        %234 = vmatprep.subr.bf16.mxu0 0
        %235 = vmatpush2.bf16.msra.mxu0 0
        %236 = vmatprep.subr.bf16.mxu0 0
        %237 = vmatpush2.bf16.msra.mxu0 0
        %238 = vmatprep.subr.bf16.mxu0 0
        %239 = vmatpush2.bf16.msra.mxu0 0
        %240 = vmatprep.subr.bf16.mxu0 0
        %241 = vmatpush2.bf16.msra.mxu0 0
        %242 = vmatprep.subr.bf16.mxu0 0
        %243 = vmatpush2.bf16.msra.mxu0 0
        %244 = vmatprep.mubr.bf16.mxu0 0
        %245 = vmatmul.mubr.bf16.gmra.mxu0 %v210
        %v246 = vpop.f32.mrf.mxu0
        %v247 = vadd.f32 %v183, %v246
        %v248 = vpop.f32.mrf.mxu0
        %v249 = vpop.f32.mrf.mxu0
        %v250 = vadd.f32 %v183, %v249
        %v251 = vpop.f32.mrf.mxu0
        %252 = vdwg.mxu0
        %vm253 = vcmask 261120
        %254 = vst.msk [vmem:[%s163] sm:$0xff] %vm253, %v247
        %255 = vst.msk [vmem:[%s163 + $0x8] sm:$0xff] %vm253, %v250
        %s256 = sand.u32 %s93, 1
        %s257 = scalar_lea.sflag [#allocation3], %s256
        %s258 = sand.u32 %s93, 1
        %s259 = smul.addr %s258, 16
        %s260 = scalar_lea.vmem [#allocation2], %s259
        // Predicated region
        $region33: #{tpu_custom_call.1} parent=31 // pred_check
          %p261 = pneg %p103
        $region34: #{tpu_custom_call.1} parent=31 // pred_check_branch
          %263 = sbr.rel (%p261) target = $region36
        $region35: #{tpu_custom_call.1} parent=31 // pred_region
          %s265 = ssub.s32 256, 256
          %266 = vsyncadd %s257, %s265
          %s267 = smul.addr %s17, 2
          %s268 = smul.addr %s267, 128
          %s269 = scalar_lea.hbm %s3, %s268
          %s270 = sshll.u32 %s260, 4
          %s271 = int_to_ptr.vmem [resolvable:$true] %s270
          %276 = dma.vmem_to_hbm [thread:$0]  %s271, 256, %s269, %s257, 128, 128, 8
        $region36: #{tpu_custom_call.1} parent=31 // pred_fallthru
          _
      $region32: #{tpu_custom_call.1} parent=5 // pred_fallthru
        _
      %p277 = scmp.le.s32.totalorder 2, %s12
      // Predicated region
      $region37: #{tpu_custom_call.1} parent=5 // pred_check
        %p278 = pneg %p277
      $region38: #{tpu_custom_call.1} parent=5 // pred_check_branch
        %280 = sbr.rel (%p278) target = $region40
      $region39: #{tpu_custom_call.1} parent=5 // pred_region
        %s281 = ssub.s32 %s12, 2
        // Predicated region
        $region41: #{tpu_custom_call.1} parent=39 // pred_check
          %p282 = pneg %p109
        $region42: #{tpu_custom_call.1} parent=39 // pred_check_branch
          %284 = sbr.rel (%p282) target = $region44
        $region43: #{tpu_custom_call.1} parent=39 // pred_region
          %s285 = sand.u32 %s94, 1
          %s286 = scalar_lea.sflag [#allocation3], %s285
          %s287 = sand.u32 %s94, 1
          %s288 = smul.addr %s287, 16
          %s289 = scalar_lea.vmem [#allocation2], %s288
          %290 = dma.done %s286, 256
        $region44: #{tpu_custom_call.1} parent=39 // pred_fallthru
          _
      $region40: #{tpu_custom_call.1} parent=5 // pred_fallthru
        _
    $region6: #{tpu_custom_call.1} parent=1 // loop_footer
      %s16 = sadd.s32 1, %s12
    $region7: #{tpu_custom_call.1} parent=1 // loop_footer_branch
      %11 = sbr.rel target = $region3
    $region8: #{tpu_custom_call.1} parent=1 // loop_exit
      _
    %291 = vsyncpa [#allocation3], 1
    %s292 = scalar_lea.sflag [#allocation3], 1
    %293 = vsyncpa %s292, 1

// kernel: tpu_custom_call.1
$region0: #{tpu_custom_call.1}
  #allocation0 [shape = 'u32[]', space=smem, size = 0x4, offset = 0x4, fixed_abs, tag = 'smem constant byte address 0x4 - core index']
  #allocation1 [shape = 'u32[144,128]{1,0:T(1,128)}', space=vmem, size = 0x12000, scoped, tag = 'internal scratch']
  %s0 = inlined_call_operand.vmem [shape: bf16[2,16,48], index: 0, kind: input, shape index: {}]
  %s1 = inlined_call_operand.vmem [shape: bf16[48,32], index: 1, kind: input, shape index: {}]
  %s2 = inlined_call_operand.vmem [shape: f32[1,32], index: 2, kind: input, shape index: {}]
  %s3 = inlined_call_operand.hbm [shape: f32[2,16,32], index: 3, kind: output, shape index: {}]
  %s4 = sld [smem:[#allocation0]]
  $region45: #{tpu_custom_call.1} parent=0
    _
  %s6 = ssub.s32 1, %s4
  %s7 = scalar_select 0, %s6, %s4
  $region1: #{tpu_custom_call.1} parent=0
    #allocation2 [shape = 'u8[16384]{0}', space=vmem, size = 0x4000, scoped, tag = 'output window, operand 0']
    #allocation3 [shape = 's32[2]{0}', space=sflag, size = 0x8, scoped, tag = 'scoped memory for tpu_custom_call.1']
    %8 = vsyncpa [#allocation3], 0
    %s9 = scalar_lea.sflag [#allocation3], 1
    %10 = vsyncpa %s9, 0
    loop: start=0, step=1, limit=4
    $region2: #{tpu_custom_call.1} parent=1 // loop_pre_header
      _
    $region3: #{tpu_custom_call.1} parent=1 // loop_header
      %s12 = sphi 0, %s16
      %p13 = scmp.ge.s32.totalorder %s12, 4
      %s22 = sphi 0, %s24
      %s25 = sphi 0, %s22
      %s26 = sphi 0, %s25
      %s42 = sphi 0, %s26
      %s46 = sphi 0, %s46
      %s48 = sphi 0, %s46
      %s49 = sphi 0, %s48
      %s63 = sphi 0, %s49
      %s67 = sphi 0, %s67
      %s69 = sphi 0, %s67
      %s70 = sphi 0, %s69
      %s84 = sphi 0, %s70
      %s90 = sphi 0, %s92
      %s93 = sphi 0, %s90
      %s94 = sphi 0, %s93
      %s110 = sphi 0, %s94
    $region4: #{tpu_custom_call.1} parent=1 // loop_header_branch
      %15 = sbr.rel (%p13) target = $region8
    $region5: #{tpu_custom_call.1} parent=1 // loop_body
      %s17 = ssub.s32 %s12, 1
      %s18 = ssub.s32 %s12, 2
      %s19 = sadd.s32 %s12, 1
      %s20 = ssub.s32 %s12, %s19
      %p21 = scmp.eq.s32.totalorder %s20, 0
      %s23 = sadd.s32 %s22, 1
      %s24 = scalar_select %p21, %s22, %s23
      %p27 = pneg %p21
      %p28 = scmp.eq.s32.totalorder %s12, 1
      %p29 = por %p27, %p28
      %p30 = scmp.ne.s32.totalorder %s22, %s25
      %p31 = scmp.eq.s32.totalorder %s12, 0
      %p32 = por %p30, %p31
      %p33 = scmp.ne.s32.totalorder %s22, %s25
      %p34 = scmp.eq.s32.totalorder %s17, 1
      %p35 = por %p33, %p34
      %p36 = scmp.ne.s32.totalorder %s25, %s26
      %p37 = scmp.eq.s32.totalorder %s17, 0
      %p38 = por %p36, %p37
      %p39 = scmp.ne.s32.totalorder %s25, %s26
      %p40 = scmp.eq.s32.totalorder %s18, 1
      %p41 = por %p39, %p40
      %p43 = scmp.ne.s32.totalorder %s26, %s42
      %p44 = scmp.eq.s32.totalorder %s18, 0
      %p45 = por %p43, %p44
      %s47 = sadd.s32 %s46, 1
      %p50 = scmp.eq.s32.totalorder %s12, 1
      %p51 = scmp.ne.s32.totalorder %s46, %s48
      %p52 = scmp.eq.s32.totalorder %s12, 0
      %p53 = por %p51, %p52
      %p54 = scmp.ne.s32.totalorder %s46, %s48
      %p55 = scmp.eq.s32.totalorder %s17, 1
      %p56 = por %p54, %p55
      %p57 = scmp.ne.s32.totalorder %s48, %s49
      %p58 = scmp.eq.s32.totalorder %s17, 0
      %p59 = por %p57, %p58
      %p60 = scmp.ne.s32.totalorder %s48, %s49
      %p61 = scmp.eq.s32.totalorder %s18, 1
      %p62 = por %p60, %p61
      %p64 = scmp.ne.s32.totalorder %s49, %s63
      %p65 = scmp.eq.s32.totalorder %s18, 0
      %p66 = por %p64, %p65
      %s68 = sadd.s32 %s67, 1
      %p71 = scmp.eq.s32.totalorder %s12, 1
      %p72 = scmp.ne.s32.totalorder %s67, %s69
      %p73 = scmp.eq.s32.totalorder %s12, 0
      %p74 = por %p72, %p73
      %p75 = scmp.ne.s32.totalorder %s67, %s69
      %p76 = scmp.eq.s32.totalorder %s17, 1
      %p77 = por %p75, %p76
      %p78 = scmp.ne.s32.totalorder %s69, %s70
      %p79 = scmp.eq.s32.totalorder %s17, 0
      %p80 = por %p78, %p79
      %p81 = scmp.ne.s32.totalorder %s69, %s70
      %p82 = scmp.eq.s32.totalorder %s18, 1
      %p83 = por %p81, %p82
      %p85 = scmp.ne.s32.totalorder %s70, %s84
      %p86 = scmp.eq.s32.totalorder %s18, 0
      %p87 = por %p85, %p86
      %s88 = ssub.s32 %s12, %s19
      %p89 = scmp.eq.s32.totalorder %s88, 0
      %s91 = sadd.s32 %s90, 1
      %s92 = scalar_select %p89, %s90, %s91
      %p95 = pneg %p89
      %p96 = scmp.eq.s32.totalorder %s12, 1
      %p97 = por %p95, %p96
      %p98 = scmp.ne.s32.totalorder %s90, %s93
      %p99 = scmp.eq.s32.totalorder %s12, 0
      %p100 = por %p98, %p99
      %p101 = scmp.ne.s32.totalorder %s90, %s93
      %p102 = scmp.eq.s32.totalorder %s17, 1
      %p103 = por %p101, %p102
      %p104 = scmp.ne.s32.totalorder %s93, %s94
      %p105 = scmp.eq.s32.totalorder %s17, 0
      %p106 = por %p104, %p105
      %p107 = scmp.ne.s32.totalorder %s93, %s94
      %p108 = scmp.eq.s32.totalorder %s18, 1
      %p109 = por %p107, %p108
      %p111 = scmp.ne.s32.totalorder %s94, %s110
      %p112 = scmp.eq.s32.totalorder %s18, 0
      %p113 = por %p111, %p112
      %p114 = scmp.le.s32.totalorder 1, %s12
      %p115 = scmp.lt.s32.totalorder %s12, 3
      %p116 = pnand %p114, %p115
      %p117 = pneg %p116
      // Predicated region
      $region9: #{tpu_custom_call.1} parent=5 // pred_check
        _
      $region10: #{tpu_custom_call.1} parent=5 // pred_check_branch
        %119 = sbr.rel (%p116) target = $region12
      $region11: #{tpu_custom_call.1} parent=5 // pred_region
        %s120 = ssub.s32 %s12, 1
        // Predicated region
        $region13: #{tpu_custom_call.1} parent=11 // pred_check
          %p121 = pneg %p59
        $region14: #{tpu_custom_call.1} parent=11 // pred_check_branch
          %123 = sbr.rel (%p121) target = $region16
        $region15: #{tpu_custom_call.1} parent=11 // pred_region
          _
        $region16: #{tpu_custom_call.1} parent=11 // pred_fallthru
          _
        // Predicated region
        $region17: #{tpu_custom_call.1} parent=11 // pred_check
          %p124 = pneg %p80
        $region18: #{tpu_custom_call.1} parent=11 // pred_check_branch
          %126 = sbr.rel (%p124) target = $region20
        $region19: #{tpu_custom_call.1} parent=11 // pred_region
          _
        $region20: #{tpu_custom_call.1} parent=11 // pred_fallthru
          _
      $region12: #{tpu_custom_call.1} parent=5 // pred_fallthru
        _
      %p127 = scmp.lt.s32.totalorder %s12, 2
      // Predicated region
      $region21: #{tpu_custom_call.1} parent=5 // pred_check
        %p128 = pneg %p127
      $region22: #{tpu_custom_call.1} parent=5 // pred_check_branch
        %130 = sbr.rel (%p128) target = $region24
      $region23: #{tpu_custom_call.1} parent=5 // pred_region
        // Predicated region
        $region25: #{tpu_custom_call.1} parent=23 // pred_check
          %p131 = pneg %p32
        $region26: #{tpu_custom_call.1} parent=23 // pred_check_branch
          %133 = sbr.rel (%p131) target = $region28
        $region27: #{tpu_custom_call.1} parent=23 // pred_region
          %p134 = scmp.lt.s32.totalorder %s12, 1
          %s135 = scalar_select %p134, %s12, 1
          %s136 = smul.addr %s135, 2
          %s137 = smul.addr %s136, 4
          %s138 = scalar_lea.vmem %s0, %s137
        $region28: #{tpu_custom_call.1} parent=23 // pred_fallthru
          _
      $region24: #{tpu_custom_call.1} parent=5 // pred_fallthru
        _
      %p139 = scmp.le.s32.totalorder 1, %s12
      %p140 = scmp.lt.s32.totalorder %s12, 3
      %p141 = pnand %p139, %p140
      %p142 = pneg %p141
      // Predicated region
      $region29: #{tpu_custom_call.1} parent=5 // pred_check
        _
      $region30: #{tpu_custom_call.1} parent=5 // pred_check_branch
        %144 = sbr.rel (%p141) target = $region32
      $region31: #{tpu_custom_call.1} parent=5 // pred_region
        %s145 = ssub.s32 %s12, 1
        %p146 = scmp.lt.s32.totalorder %s17, 1
        %s147 = scalar_select %p146, %s17, 1
        %s148 = smul.addr %s147, 2
        %s149 = smul.addr %s148, 4
        %s150 = scalar_lea.vmem %s0, %s149
        %p151 = pneg %p38
        %p152 = pneg %p35
        %p153 = pneg %p59
        %p154 = pneg %p56
        %p155 = pneg %p80
        %p156 = pneg %p77
        %p157 = pneg %p106
        %p158 = pneg %p103
        %s159 = sand.u32 %s93, 1
        %s160 = scalar_lea.sflag [#allocation3], %s159
        %s161 = sand.u32 %s93, 1
        %s162 = smul.addr %s161, 16
        %s163 = scalar_lea.vmem [#allocation2], %s162
        %p164 = scmp.lt.s32.totalorder %s17, 1
        %s165 = scalar_select %p164, %s17, 1
        %s166 = smul.addr %s165, 2
        %s167 = smul.addr %s166, 4
        %s168 = scalar_lea.vmem %s0, %s167
        %v170 = vld [vmem:[%s168] sm:$0xf]
        %v171 = vld [vmem:[%s168 + $0x4] sm:$0xf]
        %v172 = vld [vmem:[%s1] sm:$0xf]
        %v173 = vld [vmem:[%s1 + $0x4] sm:$0xf]
        %v174 = vld [vmem:[%s1 + $0x8] sm:$0xf]
        %v175 = vld [vmem:[%s1 + $0xc] sm:$0xf]
        %v176 = vld [vmem:[%s1 + $0x10] sm:$0xf]
        %v177 = vld [vmem:[%s1 + $0x14] sm:$0xf]
        %v178 = vld [vmem:[%s2] sm:$0x1]
        %v180 = vlaneseq
        %v181 = vshrl.u32 %v180, 7
        %v182 = vsub.s32 0, %v181
        %v183 = vrot.slane %v178, %v182
        %v187 = vunpack.c.l.b16 %v170
        %v188 = vunpack.c.l.b16 %v171
        %v189 = vpack.c.b16 %v188, %v187
        %v196 = vunpack.c.l.b16 %v172
        %v197 = vunpack.c.l.b16 %v173
        %v198 = vunpack.c.l.b16 %v174
        %v199 = vunpack.c.l.b16 %v175
        %v200 = vunpack.c.l.b16 %v176
        %v201 = vunpack.c.l.b16 %v177
        %v202 = vpack.c.b16 %v197, %v196
        %v203 = vpack.c.b16 %v199, %v198
        %v204 = vpack.c.b16 %v201, %v200
        %vm208 = vcmask 392192
        %v210 = vsel %vm208, %v189, 0
        %212 = vmatprep.subr.bf16.mxu0 0
        %213 = vmatpush1.bf16.msra.mxu0 0
        %214 = vmatprep.subr.bf16.mxu0 0
        %215 = vmatpush1.bf16.msra.mxu0 0
        %216 = vmatprep.subr.bf16.mxu0 0
        %217 = vmatpush1.bf16.msra.mxu0 0
        %218 = vmatprep.subr.bf16.mxu0 0
        %219 = vmatpush1.bf16.msra.mxu0 0
        %220 = vmatprep.subr.bf16.mxu0 0
        %221 = vmatpush1.bf16.msra.mxu0 0
        %222 = vmatprep.subr.bf16.mxu0 0
        %223 = vmatpush1.bf16.msra.mxu0 %v204
        %224 = vmatprep.subr.bf16.mxu0 0
        %225 = vmatpush1.bf16.msra.mxu0 %v203
        %226 = vmatprep.subr.bf16.mxu0 0
        %227 = vmatpush1.bf16.msra.mxu0 %v202
        %228 = vmatprep.subr.bf16.mxu0 0
        %229 = vmatpush2.bf16.msra.mxu0 0
        %230 = vmatprep.subr.bf16.mxu0 0
        %231 = vmatpush2.bf16.msra.mxu0 0
        %232 = vmatprep.subr.bf16.mxu0 0
        %233 = vmatpush2.bf16.msra.mxu0 0
        %234 = vmatprep.subr.bf16.mxu0 0
        %235 = vmatpush2.bf16.msra.mxu0 0
        %236 = vmatprep.subr.bf16.mxu0 0
        %237 = vmatpush2.bf16.msra.mxu0 0
        %238 = vmatprep.subr.bf16.mxu0 0
        %239 = vmatpush2.bf16.msra.mxu0 0
        %240 = vmatprep.subr.bf16.mxu0 0
        %241 = vmatpush2.bf16.msra.mxu0 0
        %242 = vmatprep.subr.bf16.mxu0 0
        %243 = vmatpush2.bf16.msra.mxu0 0
        %244 = vmatprep.mubr.bf16.mxu0 0
        %245 = vmatmul.mubr.bf16.gmra.mxu0 %v210
        %v246 = vpop.f32.mrf.mxu0
        %v247 = vadd.f32 %v183, %v246
        %v248 = vpop.f32.mrf.mxu0
        %v249 = vpop.f32.mrf.mxu0
        %v250 = vadd.f32 %v183, %v249
        %v251 = vpop.f32.mrf.mxu0
        %252 = vdwg.mxu0
        %vm253 = vcmask 261120
        %254 = vst.msk [vmem:[%s163] sm:$0xff] %vm253, %v247
        %255 = vst.msk [vmem:[%s163 + $0x8] sm:$0xff] %vm253, %v250
        %s256 = sand.u32 %s93, 1
        %s257 = scalar_lea.sflag [#allocation3], %s256
        %s258 = sand.u32 %s93, 1
        %s259 = smul.addr %s258, 16
        %s260 = scalar_lea.vmem [#allocation2], %s259
        // Predicated region
        $region33: #{tpu_custom_call.1} parent=31 // pred_check
          %p261 = pneg %p103
        $region34: #{tpu_custom_call.1} parent=31 // pred_check_branch
          %263 = sbr.rel (%p261) target = $region36
        $region35: #{tpu_custom_call.1} parent=31 // pred_region
          %s265 = ssub.s32 256, 256
          %266 = vsyncadd %s257, %s265
          %s267 = smul.addr %s17, 2
          %s268 = smul.addr %s267, 128
          %s269 = scalar_lea.hbm %s3, %s268
          %s270 = sshll.u32 %s260, 4
          %s271 = int_to_ptr.vmem [resolvable:$true] %s270
          %276 = dma.vmem_to_hbm [thread:$0]  %s271, 256, %s269, %s257, 128, 128, 8
        $region36: #{tpu_custom_call.1} parent=31 // pred_fallthru
          _
      $region32: #{tpu_custom_call.1} parent=5 // pred_fallthru
        _
      %p277 = scmp.le.s32.totalorder 2, %s12
      // Predicated region
      $region37: #{tpu_custom_call.1} parent=5 // pred_check
        %p278 = pneg %p277
      $region38: #{tpu_custom_call.1} parent=5 // pred_check_branch
        %280 = sbr.rel (%p278) target = $region40
      $region39: #{tpu_custom_call.1} parent=5 // pred_region
        %s281 = ssub.s32 %s12, 2
        // Predicated region
        $region41: #{tpu_custom_call.1} parent=39 // pred_check
          %p282 = pneg %p109
        $region42: #{tpu_custom_call.1} parent=39 // pred_check_branch
          %284 = sbr.rel (%p282) target = $region44
        $region43: #{tpu_custom_call.1} parent=39 // pred_region
          %s285 = sand.u32 %s94, 1
          %s286 = scalar_lea.sflag [#allocation3], %s285
          %s287 = sand.u32 %s94, 1
          %s288 = smul.addr %s287, 16
          %s289 = scalar_lea.vmem [#allocation2], %s288
          %290 = dma.done %s286, 256
        $region44: #{tpu_custom_call.1} parent=39 // pred_fallthru
          _
      $region40: #{tpu_custom_call.1} parent=5 // pred_fallthru
        _
    $region6: #{tpu_custom_call.1} parent=1 // loop_footer
      %s16 = sadd.s32 1, %s12
    $region7: #{tpu_custom_call.1} parent=1 // loop_footer_branch
      %11 = sbr.rel target = $region3
    $region8: #{tpu_custom_call.1} parent=1 // loop_exit
      _
    %291 = vsyncpa [#allocation3], 1
    %s292 = scalar_lea.sflag [#allocation3], 1
    %293 = vsyncpa %s292, 1

</llo_original>
